<compile_context>
chip_gen: v7x
topology: tpu7x:2x2x1
jax: 0.10.0
libtpu: 0.0.40
codegen_flags: <defaults>
</compile_context>

<pallas_src>
import functools

import jax
import jax.numpy as jnp
from jax.experimental import pallas as pl
from jax.experimental.pallas import tpu as pltpu


# -----------------------------------------------------------------------------
# Pallas kernels: Linear -> ReLU -> (Identity dropout) -> Linear
# -----------------------------------------------------------------------------
def _head_kernel_vpu(cls_ref, w1_ref, b1_ref, w2row_ref, b2_ref, out_ref):
    # cls_ref   : [TB, H]
    # w1_ref    : [H, C], b1_ref : [1, C]
    # w2row_ref : [1, C]  (== w2[:, 0] as a row), b2_ref : [1, 1]
    # out_ref   : [TB, 1]
    h = jnp.dot(cls_ref[...], w1_ref[...], preferred_element_type=jnp.float32)
    h = jnp.maximum(h + b1_ref[...], jnp.float32(0.0))          # ReLU
    # num_labels == 1: VPU multiply + lane reduction instead of an N=1 matmul.
    logits = jnp.sum(h * w2row_ref[...], axis=-1, keepdims=True) + b2_ref[...]
    out_ref[...] = logits.astype(out_ref.dtype)


def _head_kernel_mxu(cls_ref, w1_ref, b1_ref, w2_ref, b2_ref, out_ref):
    # General num_labels > 1 path.
    h = jnp.dot(cls_ref[...], w1_ref[...], preferred_element_type=jnp.float32)
    h = jnp.maximum(h + b1_ref[...], jnp.float32(0.0))          # ReLU
    logits = jnp.dot(h, w2_ref[...], preferred_element_type=jnp.float32) + b2_ref[...]
    out_ref[...] = logits.astype(out_ref.dtype)


# -----------------------------------------------------------------------------
# Wrapper: CLS-only input, batch-tiled grid, resident weights.
# -----------------------------------------------------------------------------
@functools.partial(jax.jit, static_argnames=("block_b",))
def classifier_head(cls_state, w1, b1, w2, b2, *, block_b=128):
    """Classifier head on the [B, H] CLS states, fully inside one pallas_call."""
    B, H = cls_state.shape
    C, L = w2.shape

    # Batch tile: multiple of 8 sublanes; cap at block_b rows.
    if B >= block_b:
        TB = block_b
    else:
        TB = max(8, ((B + 7) // 8) * 8)
    B_pad = ((B + TB - 1) // TB) * TB
    if B_pad != B:
        cls_state = jnp.pad(cls_state, ((0, B_pad - B), (0, 0)))
    grid = (pl.cdiv(B_pad, TB),)

    b1_2d = b1.reshape(1, C)

    use_vpu_reduce = (L == 1)
    if use_vpu_reduce:
        kernel = _head_kernel_vpu
        w2_in = w2.reshape(1, C)          # column -> row vector
        b2_in = b2.reshape(1, 1)
        w2_spec = pl.BlockSpec((1, C), lambda i: (0, 0))
        b2_spec = pl.BlockSpec((1, 1), lambda i: (0, 0))
    else:
        kernel = _head_kernel_mxu
        w2_in = w2
        b2_in = b2.reshape(1, L)
        w2_spec = pl.BlockSpec((C, L), lambda i: (0, 0))
        b2_spec = pl.BlockSpec((1, L), lambda i: (0, 0))

    out = pl.pallas_call(
        kernel,
        out_shape=jax.ShapeDtypeStruct((B_pad, L), jnp.float32),
        grid=grid,
        in_specs=[
            pl.BlockSpec((TB, H), lambda i: (i, 0)),   # CLS tile, double-buffered
            pl.BlockSpec((H, C), lambda i: (0, 0)),    # w1 resident
            pl.BlockSpec((1, C), lambda i: (0, 0)),    # b1 resident
            w2_spec,                                   # w2 resident
            b2_spec,                                   # b2 resident
        ],
        out_specs=pl.BlockSpec((TB, L), lambda i: (i, 0)),
        compiler_params=pltpu.CompilerParams(
            dimension_semantics=("parallel",)),        # megacore split on v7x
    )(cls_state, w1, b1_2d, w2_in, b2_in)

    return out[:B]


# -----------------------------------------------------------------------------
# Deterministic "bert_model" stub (plain JAX glue): embedding lookup + mask.
# Produces a last_hidden_state of shape [B, S, H].
# -----------------------------------------------------------------------------
def bert_stub(input_ids, attention_mask, emb_table):
    hidden = jnp.take(emb_table, input_ids, axis=0)                 # [B, S, H]
    hidden = hidden * attention_mask[..., None].astype(hidden.dtype)
    return hidden


def distilbert_custom_classifier_forward(input_ids, attention_mask, params):
    last_hidden_state = bert_stub(input_ids, attention_mask, params["emb"])
    # Slice CLS *before* the kernel: only [B, H] is ever DMA'd into VMEM.
    cls_state = last_hidden_state[:, 0, :]
    return classifier_head(
        cls_state, params["w1"], params["b1"], params["w2"], params["b2"]
    )


if __name__ == "__main__":
    # Small shapes consistent with the module's forward.
    B, S = 2, 8                 # batch, sequence length
    H = 32                      # bert_hidden_dim (small synthetic; real = 768)
    C = 32                      # classifier_hidden_dim
    L = 1                       # num_labels
    VOCAB = 50

    key = jax.random.PRNGKey(0)
    k_emb, k_w1, k_b1, k_w2, k_b2, k_ids = jax.random.split(key, 6)

    params = {
        "emb": jax.random.normal(k_emb, (VOCAB, H), jnp.float32) * 0.02,
        # stored [in, out]  (== torch nn.Linear.weight.T)
        "w1": jax.random.normal(k_w1, (H, C), jnp.float32) * (1.0 / jnp.sqrt(H)),
        "b1": jax.random.normal(k_b1, (C,), jnp.float32) * 0.01,
        "w2": jax.random.normal(k_w2, (C, L), jnp.float32) * (1.0 / jnp.sqrt(C)),
        "b2": jax.random.normal(k_b2, (L,), jnp.float32) * 0.01,
    }

    input_ids = jax.random.randint(k_ids, (B, S), 0, VOCAB, dtype=jnp.int32)
    attention_mask = jnp.ones((B, S), dtype=jnp.int32)

    logits = distilbert_custom_classifier_forward(input_ids, attention_mask, params)
    logits = jax.block_until_ready(logits)

    # Pure-JAX reference check of the head (same math, no Pallas).
    lhs = bert_stub(input_ids, attention_mask, params["emb"])
    cls = lhs[:, 0, :]
    ref = jnp.maximum(cls @ params["w1"] + params["b1"], 0.0) @ params["w2"] + params["b2"]
    assert logits.shape == (B, L)
    assert jnp.allclose(logits, ref, atol=1e-5, rtol=1e-5)

    print("KERNEL_OK")
</pallas_src>

<mosaic_0001>
module attributes {stable_mosaic.version = 11 : i64} {
  func.func @_head_kernel_vpu(%arg0: i32, %arg1: memref<8x32xf32, #tpu.memory_space<vmem>>, %arg2: memref<32x32xf32, #tpu.memory_space<vmem>>, %arg3: memref<1x32xf32, #tpu.memory_space<vmem>>, %arg4: memref<1x32xf32, #tpu.memory_space<vmem>>, %arg5: memref<1x1xf32, #tpu.memory_space<vmem>>, %arg6: memref<8x1xf32, #tpu.memory_space<vmem>>) attributes {dimension_semantics = [#tpu.dimension_semantics<parallel>], iteration_bounds = array<i64: 1>, scalar_prefetch = 0 : i64, scratch_operands = 0 : i64, tpu.core_type = #tpu.core_type<tc>, window_params = [{transform_indices = @transform_0, window_bounds = array<i64: 8, 32>}, {pipeline_mode = #tpu.pipeline_mode<synchronous>, transform_indices = @transform_1, window_bounds = array<i64: 32, 32>}, {pipeline_mode = #tpu.pipeline_mode<synchronous>, transform_indices = @transform_2, window_bounds = array<i64: 1, 32>}, {pipeline_mode = #tpu.pipeline_mode<synchronous>, transform_indices = @transform_3, window_bounds = array<i64: 1, 32>}, {pipeline_mode = #tpu.pipeline_mode<synchronous>, transform_indices = @transform_4, window_bounds = array<i64: 1, 1>}, {transform_indices = @transform_5, window_bounds = array<i64: 8, 1>}]} {
    %c0 = arith.constant 0 : index
    %c0_0 = arith.constant 0 : index
    %0 = vector.load %arg1[%c0, %c0_0] : memref<8x32xf32, #tpu.memory_space<vmem>>, vector<8x32xf32>
    %c0_1 = arith.constant 0 : index
    %c0_2 = arith.constant 0 : index
    %1 = vector.load %arg2[%c0_1, %c0_2] : memref<32x32xf32, #tpu.memory_space<vmem>>, vector<32x32xf32>
    %cst = arith.constant dense<0.000000e+00> : vector<8x32xf32>
    %2 = tpu.matmul %0, %1, %cst {dimension_numbers = #tpu.dot_dimension_numbers<[1], [0], [0], [1], [0, 0, 1, 1], [], []>} : vector<8x32xf32>, vector<32x32xf32>, vector<8x32xf32> -> vector<8x32xf32>
    %c0_3 = arith.constant 0 : index
    %c0_4 = arith.constant 0 : index
    %3 = vector.load %arg3[%c0_3, %c0_4] : memref<1x32xf32, #tpu.memory_space<vmem>>, vector<1x32xf32>
    %4 = vector.broadcast %3 : vector<1x32xf32> to vector<8x32xf32>
    %5 = arith.addf %2, %4 : vector<8x32xf32>
    %cst_5 = arith.constant 0.000000e+00 : f32
    %6 = vector.broadcast %cst_5 : f32 to vector<8x32xf32>
    %7 = arith.maximumf %5, %6 : vector<8x32xf32>
    %c0_6 = arith.constant 0 : index
    %c0_7 = arith.constant 0 : index
    %8 = vector.load %arg4[%c0_6, %c0_7] : memref<1x32xf32, #tpu.memory_space<vmem>>, vector<1x32xf32>
    %9 = vector.broadcast %8 : vector<1x32xf32> to vector<8x32xf32>
    %10 = arith.mulf %7, %9 : vector<8x32xf32>
    %cst_8 = arith.constant dense<0.000000e+00> : vector<8xf32>
    %11 = vector.multi_reduction <add>, %10, %cst_8 [1] : vector<8x32xf32> to vector<8xf32>
    %12 = vector.shape_cast %11 : vector<8xf32> to vector<8x1xf32>
    %c0_9 = arith.constant 0 : index
    %c0_10 = arith.constant 0 : index
    %13 = vector.load %arg5[%c0_9, %c0_10] : memref<1x1xf32, #tpu.memory_space<vmem>>, vector<1x1xf32>
    %14 = vector.broadcast %13 : vector<1x1xf32> to vector<8x1xf32>
    %15 = arith.addf %12, %14 : vector<8x1xf32>
    %c0_11 = arith.constant 0 : index
    %c0_12 = arith.constant 0 : index
    %16 = vector.load %arg6[%c0_11, %c0_12] : memref<8x1xf32, #tpu.memory_space<vmem>>, vector<8x1xf32>
    tpu.vector_store %arg6[%c0_11, %c0_12], %15 {strides = array<i32>} : memref<8x1xf32, #tpu.memory_space<vmem>>, vector<8x1xf32>,
    return
  }
  func.func @transform_0(%arg0: i32) -> (i32, i32) {
    %c0_i32 = arith.constant 0 : i32
    %c0_i32_0 = arith.constant 0 : i32
    return %arg0, %c0_i32 : i32, i32
  }
  func.func @transform_1(%arg0: i32) -> (i32, i32) {
    %c0_i32 = arith.constant 0 : i32
    %c0_i32_0 = arith.constant 0 : i32
    %c0_i32_1 = arith.constant 0 : i32
    return %c0_i32, %c0_i32_0 : i32, i32
  }
  func.func @transform_2(%arg0: i32) -> (i32, i32) {
    %c0_i32 = arith.constant 0 : i32
    %c0_i32_0 = arith.constant 0 : i32
    %c0_i32_1 = arith.constant 0 : i32
    return %c0_i32, %c0_i32_0 : i32, i32
  }
  func.func @transform_3(%arg0: i32) -> (i32, i32) {
    %c0_i32 = arith.constant 0 : i32
    %c0_i32_0 = arith.constant 0 : i32
    %c0_i32_1 = arith.constant 0 : i32
    return %c0_i32, %c0_i32_0 : i32, i32
  }
  func.func @transform_4(%arg0: i32) -> (i32, i32) {
    %c0_i32 = arith.constant 0 : i32
    %c0_i32_0 = arith.constant 0 : i32
    %c0_i32_1 = arith.constant 0 : i32
    return %c0_i32, %c0_i32_0 : i32, i32
  }
  func.func @transform_5(%arg0: i32) -> (i32, i32) {
    %c0_i32 = arith.constant 0 : i32
    %c0_i32_0 = arith.constant 0 : i32
    return %arg0, %c0_i32 : i32, i32
  }
}

</mosaic_0001>

<llo_original>
// kernel: classifier_head.1
$region0: #{classifier_head.1}
  #allocation0 [shape = 'u32[]', space=smem, size = 0x4, offset = 0x4, fixed_abs, tag = 'smem constant byte address 0x4 - core index']
  #allocation1 [shape = 'u32[144,128]{1,0:T(1,128)}', space=vmem, size = 0x12000, scoped, tag = 'internal scratch']
  #allocation2 [shape = 'f32[1,1]{1,0:T(1,128)S(1)}', space=vmem, size = 0x200, scoped, tag = 'scoped memory for classifier_head.1']
  %s0 = inlined_call_operand.vmem [shape: f32[8,32], index: 0, kind: input, shape index: {}]
  %s1 = inlined_call_operand.hbm [shape: f32[32,32], index: 1, kind: input, shape index: {}]
  %s2 = inlined_call_operand.vmem [shape: f32[1,32], index: 2, kind: input, shape index: {}]
  %s3 = inlined_call_operand.vmem [shape: f32[1,32], index: 3, kind: input, shape index: {}]
  %s4 = inlined_call_operand.<no memory space> [shape: f32[1,1], index: 4, kind: input, shape index: {}]
  %s5 = inlined_call_operand.vmem [shape: f32[8,1], index: 5, kind: output, shape index: {}]
  %s6 = sld [smem:[#allocation0]]
  $region34: #{classifier_head.1} parent=0
    _
  %s8 = ssub.s32 1, %s6
  %s9 = scalar_select 0, %s8, %s6
  %v10 = vstv %s4
  %11 = vst [vmem:[#allocation2] sm:$0x1] %v10
  $region1: #{classifier_head.1} parent=0
    #allocation3 [shape = 'u8[16384]{0}', space=vmem, size = 0x4000, scoped, tag = 'input window, operand 1, single buffered']
    #allocation4 [shape = 's32[1]{0}', space=sflag, size = 0x4, scoped, tag = 'scoped memory for classifier_head.1']
    %12 = vsyncpa [#allocation4], 0
    // Predicated region
    $region2: #{classifier_head.1} parent=1 // pred_check
      _
    $region3: #{classifier_head.1} parent=1 // pred_check_branch
      %14 = sbr.rel (0) target = $region5
    $region4: #{classifier_head.1} parent=1 // pred_region
      _
    $region5: #{classifier_head.1} parent=1 // pred_fallthru
      _
    // Predicated region
    $region6: #{classifier_head.1} parent=1 // pred_check
      _
    $region7: #{classifier_head.1} parent=1 // pred_check_branch
      %16 = sbr.rel (0) target = $region9
    $region8: #{classifier_head.1} parent=1 // pred_region
      %s18 = ssub.s32 512, 512
      %19 = vsyncadd [#allocation4], %s18
      %s20 = sshll.u32 [#allocation3], 4
      %s21 = int_to_ptr.vmem [resolvable:$true] %s20
      %26 = dma.hbm_to_vmem [thread:$0]  %s1, 512, %s21, [#allocation4], 128, 128, 8
    $region9: #{classifier_head.1} parent=1 // pred_fallthru
      _
    // Predicated region
    $region10: #{classifier_head.1} parent=1 // pred_check
      _
    $region11: #{classifier_head.1} parent=1 // pred_check_branch
      %28 = sbr.rel (0) target = $region13
    $region12: #{classifier_head.1} parent=1 // pred_region
      _
    $region13: #{classifier_head.1} parent=1 // pred_fallthru
      _
    // Predicated region
    $region14: #{classifier_head.1} parent=1 // pred_check
      _
    $region15: #{classifier_head.1} parent=1 // pred_check_branch
      %30 = sbr.rel (0) target = $region17
    $region16: #{classifier_head.1} parent=1 // pred_region
      _
    $region17: #{classifier_head.1} parent=1 // pred_fallthru
      _
    // Predicated region
    $region18: #{classifier_head.1} parent=1 // pred_check
      _
    $region19: #{classifier_head.1} parent=1 // pred_check_branch
      %32 = sbr.rel (0) target = $region21
    $region20: #{classifier_head.1} parent=1 // pred_region
      _
    $region21: #{classifier_head.1} parent=1 // pred_fallthru
      _
    // Predicated region
    $region22: #{classifier_head.1} parent=1 // pred_check
      _
    $region23: #{classifier_head.1} parent=1 // pred_check_branch
      %34 = sbr.rel (0) target = $region25
    $region24: #{classifier_head.1} parent=1 // pred_region
      %35 = dma.done [#allocation4], 512
    $region25: #{classifier_head.1} parent=1 // pred_fallthru
      _
    %v36 = vld [vmem:[%s0] sm:$0xff]
    %v37 = vld [vmem:[#allocation3] sm:$0xff]
    %v38 = vld [vmem:[#allocation3 + $0x8] sm:$0xff]
    %v39 = vld [vmem:[#allocation3 + $0x10] sm:$0xff]
    %v40 = vld [vmem:[#allocation3 + $0x18] sm:$0xff]
    %v41 = vld [vmem:[%s2] sm:$0x1]
    %v43 = vlaneseq
    %v44 = vshrl.u32 %v43, 7
    %v45 = vsub.s32 0, %v44
    %v46 = vrot.slane %v41, %v45
    %vm48 = vcmask 261120
    %v50 = vsel %vm48, %v36, 0
    %52 = vmatprep.subr.mxu0 0.0
    %53 = vmatpush1.msra.mxu0 %v37
    %54 = vmatprep.subr.mxu0 0.0
    %55 = vmatpush1.msra.mxu0 %v38
    %56 = vmatprep.subr.mxu0 0.0
    %57 = vmatpush1.msra.mxu0 %v39
    %58 = vmatprep.subr.mxu0 0.0
    %59 = vmatpush1.msra.mxu0 %v40
    %60 = vmatprep.subr.mxu0 0.0
    %61 = vmatpush1.msra.mxu0 0.0
    %62 = vmatprep.subr.mxu0 0.0
    %63 = vmatpush1.msra.mxu0 0.0
    %64 = vmatprep.subr.mxu0 0.0
    %65 = vmatpush1.msra.mxu0 0.0
    %66 = vmatprep.subr.mxu0 0.0
    %67 = vmatpush1.msra.mxu0 0.0
    %68 = vmatprep.subr.mxu0 0.0
    %69 = vmatpush1.msra.mxu0 0.0
    %70 = vmatprep.subr.mxu0 0.0
    %71 = vmatpush1.msra.mxu0 0.0
    %72 = vmatprep.subr.mxu0 0.0
    %73 = vmatpush1.msra.mxu0 0.0
    %74 = vmatprep.subr.mxu0 0.0
    %75 = vmatpush1.msra.mxu0 0.0
    %76 = vmatprep.subr.mxu0 0.0
    %77 = vmatpush1.msra.mxu0 0.0
    %78 = vmatprep.subr.mxu0 0.0
    %79 = vmatpush1.msra.mxu0 0.0
    %80 = vmatprep.subr.mxu0 0.0
    %81 = vmatpush1.msra.mxu0 0.0
    %82 = vmatprep.subr.mxu0 0.0
    %83 = vmatpush1.msra.mxu0 0.0
    %84 = vmatprep.subr.mxu0 0.0
    %85 = vmatpush1.msra.mxu0 0.0
    %86 = vmatprep.subr.mxu0 0.0
    %87 = vmatpush1.msra.mxu0 0.0
    %88 = vmatprep.subr.mxu0 0.0
    %89 = vmatpush1.msra.mxu0 0.0
    %90 = vmatprep.subr.mxu0 0.0
    %91 = vmatpush1.msra.mxu0 0.0
    %92 = vmatprep.subr.mxu0 0.0
    %93 = vmatpush1.msra.mxu0 0.0
    %94 = vmatprep.subr.mxu0 0.0
    %95 = vmatpush1.msra.mxu0 0.0
    %96 = vmatprep.subr.mxu0 0.0
    %97 = vmatpush1.msra.mxu0 0.0
    %98 = vmatprep.subr.mxu0 0.0
    %99 = vmatpush1.msra.mxu0 0.0
    %100 = vmatprep.subr.mxu0 0.0
    %101 = vmatpush1.msra.mxu0 0.0
    %102 = vmatprep.subr.mxu0 0.0
    %103 = vmatpush1.msra.mxu0 0.0
    %104 = vmatprep.subr.mxu0 0.0
    %105 = vmatpush1.msra.mxu0 0.0
    %106 = vmatprep.subr.mxu0 0.0
    %107 = vmatpush1.msra.mxu0 0.0
    %108 = vmatprep.subr.mxu0 0.0
    %109 = vmatpush1.msra.mxu0 0.0
    %110 = vmatprep.subr.mxu0 0.0
    %111 = vmatpush1.msra.mxu0 0.0
    %112 = vmatprep.subr.mxu0 0.0
    %113 = vmatpush1.msra.mxu0 0.0
    %114 = vmatprep.subr.mxu0 0.0
    %115 = vmatpush1.msra.mxu0 0.0
    %116 = vmatprep.mubr.f32.mxu0 0.0
    %117 = vmatmul.mubr.f32.gmra.mrb[0].mxu0 %v50
    %v118 = vpop.f32.mrb[0].mxu0
    %v119 = vadd.f32 %v46, %v118
    %v120 = vpop.f32.mrb[0].mxu0
    %121 = vdwg.mxu0
    %v122 = vmax.f32 %v119, 0.0
    %v123 = vld [vmem:[%s3] sm:$0x1]
    %v125 = vlaneseq
    %v126 = vshrl.u32 %v125, 7
    %v127 = vsub.s32 0, %v126
    %v128 = vrot.slane %v123, %v127
    %v130 = vmul.f32 %v122, %v128
    %v131 = vsel %vm48, %v130, 0.0
    %132 = vadd.xlane.f32.xlu0 %v131
    %v133 = vpop.xlane.xlu0 %132
    %v134 = vld [vmem:[#allocation2] sm:$0x1]
    %v136 = vlaneseq
    %v137 = vshrl.u32 %v136, 7
    %v138 = vsub.s32 0, %v137
    %v139 = vrot.slane %v134, %v138
    %v141 = vadd.f32 %v133, %v139
    %vm142 = vcmask 7168
    %143 = vst.msk [vmem:[%s5] sm:$0xff] %vm142, %v141
    // Predicated region
    $region26: #{classifier_head.1} parent=1 // pred_check
      _
    $region27: #{classifier_head.1} parent=1 // pred_check_branch
      %145 = sbr.rel (0) target = $region29
    $region28: #{classifier_head.1} parent=1 // pred_region
      _
    $region29: #{classifier_head.1} parent=1 // pred_fallthru
      _
    // Predicated region
    $region30: #{classifier_head.1} parent=1 // pred_check
      _
    $region31: #{classifier_head.1} parent=1 // pred_check_branch
      %147 = sbr.rel (0) target = $region33
    $region32: #{classifier_head.1} parent=1 // pred_region
      _
    $region33: #{classifier_head.1} parent=1 // pred_fallthru
      _
    %148 = vsyncpa [#allocation4], 1

</llo_original>
